<compile_context>
chip_gen: v7x
topology: tpu7x:2x2x1
jax: 0.10.0
libtpu: 0.0.40
codegen_flags: <defaults>
</compile_context>

<pallas_src>
import jax
import jax.numpy as jnp
from jax.experimental import pallas as pl
from jax.experimental.pallas import tpu as pltpu

CIN = 3    # conv input channels (after torch .expand)
COUT = 3   # conv output channels (folded away by the channel mean)
KH = 3
KW = 3


def conv_mean_kernel(x_ref, w_ref, b_ref, o_ref, pad_ref):
    """Fused in-VMEM pad + mean-folded 3x3 conv for one block of images.

    x_ref:   (block_b, cin, H, W)        VMEM  unpadded input block
    w_ref:   (cin*KH*KW,)                SMEM  weights folded over out-channels
    b_ref:   (1,)                        SMEM  mean(bias)
    o_ref:   (block_b, 1, H, W)          VMEM
    pad_ref: (cin, block_b*(H+2), W+2)   VMEM scratch (zero border == pad=1)
    """
    block_b, cin, H, W = x_ref.shape
    Hp = H + 2
    Rp = block_b * Hp          # stacked (sublane-axis) padded rows of the block

    # In-VMEM padding: zero the scratch, then copy each image's interior.
    pad_ref[...] = jnp.zeros_like(pad_ref)
    for bi in range(block_b):
        r0 = bi * Hp + 1
        pad_ref[:, r0:r0 + H, 1:1 + W] = x_ref[bi].astype(jnp.float32)

    # Mean-folded conv: KH*KW taps per input channel over the whole stacked
    # slab (all block_b images at once).
    acc = jnp.zeros((Rp - 2, W), jnp.float32)
    for ci in range(cin):
        for kj in range(KW):
            # Hoisted lane shift: one shifted slab per (ci, kj); the ki taps
            # below are cheap sublane slices of it.
            xk = pad_ref[ci, :, kj:kj + W]                    # (Rp, W)
            for ki in range(KH):
                wv = w_ref[(ci * KH + ki) * KW + kj]
                acc = acc + wv * xk[ki:ki + Rp - 2, :]
    acc = acc + b_ref[0]

    # NOTE: W stays on the lane axis; for W < 128 these stores are masked.
    # A lane-packing re-layout only pays off for large batches of tiny images
    # and is intentionally not done here (W >= 128 is already lane-dense).
    for bi in range(block_b):
        r0 = bi * Hp
        o_ref[bi, 0, :, :] = acc[r0:r0 + H, :].astype(o_ref.dtype)


def dummy_model_forward(x, w, b, *, block_b=None):
    """x: (B, nc, H, W) with nc in {1, 3}; w: (3,3,3,3) OIHW; b: (3,)."""
    B, nc, H, W = x.shape
    assert nc in (1, CIN), f"torch .expand(B,3,H,W) needs nc in (1,3), got {nc}"

    # Fold the channel mean into the conv parameters (exact identity).
    w_eff = w.astype(jnp.float32).mean(axis=0)                # (CIN, KH, KW)
    if nc == 1:
        # torch .expand just replicates the single channel -> fold ci too.
        w_eff = w_eff.sum(axis=0, keepdims=True)              # (1, KH, KW)
    cin = w_eff.shape[0]
    w_flat = w_eff.reshape(-1)                                # (cin*9,) -> SMEM
    b_eff = jnp.reshape(b.astype(jnp.float32).mean(), (1,))   # (1,)     -> SMEM

    if block_b is None:
        # Fold the batch into (at most) 2 "parallel" grid steps: amortizes the
        # ~0.35us per-step pipeline overhead and keeps both v7x TCs busy.
        block_b = B // 2 if (B >= 2 and B % 2 == 0) else 1
        # Cap the block so the padded scratch + double-buffered I/O blocks stay
        # well inside the scoped VMEM limit on every generation, and so the
        # unrolled per-image copy/store loops stay short.
        blk_bytes = (cin * ((H + 2) * (W + 2) * 4 + 2 * H * W * x.dtype.itemsize)
                     + 2 * H * W * 4)
        max_blk = min(32, max(1, (8 << 20) // max(blk_bytes, 1)))
        block_b = max(1, min(block_b, max_blk))
        while B % block_b:
            block_b -= 1
    grid_b = B // block_b

    # TODO(synk): for very large H*W, strip-tile H with an explicit 2-row halo
    # copy (BlockSpec blocks cannot overlap) so the padded block also fits
    # v7x's smaller 64 MiB VMEM.
    return pl.pallas_call(
        conv_mean_kernel,
        out_shape=jax.ShapeDtypeStruct((B, 1, H, W), x.dtype),
        grid=(grid_b,),
        in_specs=[
            pl.BlockSpec((block_b, cin, H, W), lambda gi: (gi, 0, 0, 0)),
            pl.BlockSpec(memory_space=pltpu.MemorySpace.SMEM),
            pl.BlockSpec(memory_space=pltpu.MemorySpace.SMEM),
        ],
        out_specs=pl.BlockSpec((block_b, 1, H, W), lambda gi: (gi, 0, 0, 0)),
        scratch_shapes=[
            pltpu.VMEM((cin, block_b * (H + 2), W + 2), jnp.float32),
        ],
        compiler_params=pltpu.CompilerParams(
            dimension_semantics=("parallel",)),
    )(x, w_flat, b_eff)


def reference_forward(x, w, b):
    B, nc, H, W = x.shape
    x3 = jnp.broadcast_to(x, (B, CIN, H, W))
    y = jax.lax.conv_general_dilated(
        x3, w, window_strides=(1, 1), padding="SAME",
        dimension_numbers=("NCHW", "OIHW", "NCHW"))
    y = y + b[None, :, None, None]
    return y.mean(axis=1, keepdims=True)


if __name__ == "__main__":
    key = jax.random.PRNGKey(0)
    kx3, kx1, kw, kb = jax.random.split(key, 4)

    B, H, W = 2, 16, 16
    fan_in = CIN * KH * KW
    bound = 1.0 / (fan_in ** 0.5)
    w = jax.random.uniform(kw, (COUT, CIN, KH, KW), jnp.float32, -bound, bound)
    b = jax.random.uniform(kb, (COUT,), jnp.float32, -bound, bound)

    # Exercise both input layouts: nc == 3 (no-op expand) and nc == 1 (the
    # torch .expand path, fully-folded 9-tap stencil).
    for kk, nc in ((kx3, 3), (kx1, 1)):
        x = jax.random.normal(kk, (B, nc, H, W), dtype=jnp.float32)
        out = jax.block_until_ready(dummy_model_forward(x, w, b))
        ref = reference_forward(x, w, b)
        assert out.shape == (B, 1, H, W), out.shape
        err = jnp.max(jnp.abs(out - ref))
        assert jnp.allclose(out, ref, atol=1e-5, rtol=1e-5), (
            f"mismatch vs reference (nc={nc}), max abs err {err}")

    print("KERNEL_OK")
</pallas_src>

<mosaic_0001>
module attributes {stable_mosaic.version = 11 : i64} {
  func.func @conv_mean_kernel(%arg0: i32, %arg1: memref<1x3x16x16xf32, #tpu.memory_space<vmem>>, %arg2: memref<27xf32, #tpu.memory_space<smem>>, %arg3: memref<1xf32, #tpu.memory_space<smem>>, %arg4: memref<1x1x16x16xf32, #tpu.memory_space<vmem>>, %arg5: memref<3x18x18xf32, #tpu.memory_space<vmem>>) attributes {dimension_semantics = [#tpu.dimension_semantics<parallel>], iteration_bounds = array<i64: 2>, scalar_prefetch = 0 : i64, scratch_operands = 1 : i64, tpu.core_type = #tpu.core_type<tc>, window_params = [{transform_indices = @transform_0, window_bounds = array<i64: 1, 3, 16, 16>}, {transform_indices = @transform_1, window_bounds = array<i64: 27>}, {transform_indices = @transform_2, window_bounds = array<i64: 1>}, {transform_indices = @transform_3, window_bounds = array<i64: 1, 1, 16, 16>}]} {
    %cst = arith.constant 0.000000e+00 : f32
    %0 = vector.broadcast %cst : f32 to vector<3x18x18xf32>
    %c0 = arith.constant 0 : index
    %c0_0 = arith.constant 0 : index
    %c0_1 = arith.constant 0 : index
    %1 = vector.load %arg5[%c0, %c0_0, %c0_1] : memref<3x18x18xf32, #tpu.memory_space<vmem>>, vector<3x18x18xf32>
    tpu.vector_store %arg5[%c0, %c0_0, %c0_1], %0 {strides = array<i32>} : memref<3x18x18xf32, #tpu.memory_space<vmem>>, vector<3x18x18xf32>,
    %c0_2 = arith.constant 0 : index
    %c0_3 = arith.constant 0 : index
    %c0_4 = arith.constant 0 : index
    %c0_5 = arith.constant 0 : index
    %2 = vector.load %arg1[%c0_2, %c0_3, %c0_4, %c0_5] : memref<1x3x16x16xf32, #tpu.memory_space<vmem>>, vector<1x3x16x16xf32>
    %3 = vector.shape_cast %2 : vector<1x3x16x16xf32> to vector<3x16x16xf32>
    %c0_6 = arith.constant 0 : index
    %c1 = arith.constant 1 : index
    %c1_7 = arith.constant 1 : index
    %4 = vector.load %arg5[%c0_6, %c1, %c1_7] : memref<3x18x18xf32, #tpu.memory_space<vmem>>, vector<3x16x16xf32>
    tpu.vector_store %arg5[%c0_6, %c1, %c1_7], %3 {strides = array<i32>} : memref<3x18x18xf32, #tpu.memory_space<vmem>>, vector<3x16x16xf32>,
    %cst_8 = arith.constant 0.000000e+00 : f32
    %5 = vector.broadcast %cst_8 : f32 to vector<16x16xf32>
    %c0_9 = arith.constant 0 : index
    %c0_10 = arith.constant 0 : index
    %c0_11 = arith.constant 0 : index
    %6 = vector.load %arg5[%c0_9, %c0_10, %c0_11] : memref<3x18x18xf32, #tpu.memory_space<vmem>>, vector<1x18x16xf32>
    %7 = vector.shape_cast %6 : vector<1x18x16xf32> to vector<18x16xf32>
    %c0_12 = arith.constant 0 : index
    %8 = memref.load %arg2[%c0_12] : memref<27xf32, #tpu.memory_space<smem>>
    %9 = vector.extract_strided_slice %7 {offsets = [0, 0], sizes = [16, 16], strides = [1, 1]} : vector<18x16xf32> to vector<16x16xf32>
    %10 = vector.broadcast %8 : f32 to vector<16x16xf32>
    %11 = arith.mulf %10, %9 : vector<16x16xf32>
    %12 = arith.addf %5, %11 : vector<16x16xf32>
    %c3 = arith.constant 3 : index
    %13 = memref.load %arg2[%c3] : memref<27xf32, #tpu.memory_space<smem>>
    %14 = vector.extract_strided_slice %7 {offsets = [1, 0], sizes = [16, 16], strides = [1, 1]} : vector<18x16xf32> to vector<16x16xf32>
    %15 = vector.broadcast %13 : f32 to vector<16x16xf32>
    %16 = arith.mulf %15, %14 : vector<16x16xf32>
    %17 = arith.addf %12, %16 : vector<16x16xf32>
    %c6 = arith.constant 6 : index
    %18 = memref.load %arg2[%c6] : memref<27xf32, #tpu.memory_space<smem>>
    %19 = vector.extract_strided_slice %7 {offsets = [2, 0], sizes = [16, 16], strides = [1, 1]} : vector<18x16xf32> to vector<16x16xf32>
    %20 = vector.broadcast %18 : f32 to vector<16x16xf32>
    %21 = arith.mulf %20, %19 : vector<16x16xf32>
    %22 = arith.addf %17, %21 : vector<16x16xf32>
    %c0_13 = arith.constant 0 : index
    %c0_14 = arith.constant 0 : index
    %c1_15 = arith.constant 1 : index
    %23 = vector.load %arg5[%c0_13, %c0_14, %c1_15] : memref<3x18x18xf32, #tpu.memory_space<vmem>>, vector<1x18x16xf32>
    %24 = vector.shape_cast %23 : vector<1x18x16xf32> to vector<18x16xf32>
    %c1_16 = arith.constant 1 : index
    %25 = memref.load %arg2[%c1_16] : memref<27xf32, #tpu.memory_space<smem>>
    %26 = vector.extract_strided_slice %24 {offsets = [0, 0], sizes = [16, 16], strides = [1, 1]} : vector<18x16xf32> to vector<16x16xf32>
    %27 = vector.broadcast %25 : f32 to vector<16x16xf32>
    %28 = arith.mulf %27, %26 : vector<16x16xf32>
    %29 = arith.addf %22, %28 : vector<16x16xf32>
    %c4 = arith.constant 4 : index
    %30 = memref.load %arg2[%c4] : memref<27xf32, #tpu.memory_space<smem>>
    %31 = vector.extract_strided_slice %24 {offsets = [1, 0], sizes = [16, 16], strides = [1, 1]} : vector<18x16xf32> to vector<16x16xf32>
    %32 = vector.broadcast %30 : f32 to vector<16x16xf32>
    %33 = arith.mulf %32, %31 : vector<16x16xf32>
    %34 = arith.addf %29, %33 : vector<16x16xf32>
    %c7 = arith.constant 7 : index
    %35 = memref.load %arg2[%c7] : memref<27xf32, #tpu.memory_space<smem>>
    %36 = vector.extract_strided_slice %24 {offsets = [2, 0], sizes = [16, 16], strides = [1, 1]} : vector<18x16xf32> to vector<16x16xf32>
    %37 = vector.broadcast %35 : f32 to vector<16x16xf32>
    %38 = arith.mulf %37, %36 : vector<16x16xf32>
    %39 = arith.addf %34, %38 : vector<16x16xf32>
    %c0_17 = arith.constant 0 : index
    %c0_18 = arith.constant 0 : index
    %c2 = arith.constant 2 : index
    %40 = vector.load %arg5[%c0_17, %c0_18, %c2] : memref<3x18x18xf32, #tpu.memory_space<vmem>>, vector<1x18x16xf32>
    %41 = vector.shape_cast %40 : vector<1x18x16xf32> to vector<18x16xf32>
    %c2_19 = arith.constant 2 : index
    %42 = memref.load %arg2[%c2_19] : memref<27xf32, #tpu.memory_space<smem>>
    %43 = vector.extract_strided_slice %41 {offsets = [0, 0], sizes = [16, 16], strides = [1, 1]} : vector<18x16xf32> to vector<16x16xf32>
    %44 = vector.broadcast %42 : f32 to vector<16x16xf32>
    %45 = arith.mulf %44, %43 : vector<16x16xf32>
    %46 = arith.addf %39, %45 : vector<16x16xf32>
    %c5 = arith.constant 5 : index
    %47 = memref.load %arg2[%c5] : memref<27xf32, #tpu.memory_space<smem>>
    %48 = vector.extract_strided_slice %41 {offsets = [1, 0], sizes = [16, 16], strides = [1, 1]} : vector<18x16xf32> to vector<16x16xf32>
    %49 = vector.broadcast %47 : f32 to vector<16x16xf32>
    %50 = arith.mulf %49, %48 : vector<16x16xf32>
    %51 = arith.addf %46, %50 : vector<16x16xf32>
    %c8 = arith.constant 8 : index
    %52 = memref.load %arg2[%c8] : memref<27xf32, #tpu.memory_space<smem>>
    %53 = vector.extract_strided_slice %41 {offsets = [2, 0], sizes = [16, 16], strides = [1, 1]} : vector<18x16xf32> to vector<16x16xf32>
    %54 = vector.broadcast %52 : f32 to vector<16x16xf32>
    %55 = arith.mulf %54, %53 : vector<16x16xf32>
    %56 = arith.addf %51, %55 : vector<16x16xf32>
    %c1_20 = arith.constant 1 : index
    %c0_21 = arith.constant 0 : index
    %c0_22 = arith.constant 0 : index
    %57 = vector.load %arg5[%c1_20, %c0_21, %c0_22] : memref<3x18x18xf32, #tpu.memory_space<vmem>>, vector<1x18x16xf32>
    %58 = vector.shape_cast %57 : vector<1x18x16xf32> to vector<18x16xf32>
    %c9 = arith.constant 9 : index
    %59 = memref.load %arg2[%c9] : memref<27xf32, #tpu.memory_space<smem>>
    %60 = vector.extract_strided_slice %58 {offsets = [0, 0], sizes = [16, 16], strides = [1, 1]} : vector<18x16xf32> to vector<16x16xf32>
    %61 = vector.broadcast %59 : f32 to vector<16x16xf32>
    %62 = arith.mulf %61, %60 : vector<16x16xf32>
    %63 = arith.addf %56, %62 : vector<16x16xf32>
    %c12 = arith.constant 12 : index
    %64 = memref.load %arg2[%c12] : memref<27xf32, #tpu.memory_space<smem>>
    %65 = vector.extract_strided_slice %58 {offsets = [1, 0], sizes = [16, 16], strides = [1, 1]} : vector<18x16xf32> to vector<16x16xf32>
    %66 = vector.broadcast %64 : f32 to vector<16x16xf32>
    %67 = arith.mulf %66, %65 : vector<16x16xf32>
    %68 = arith.addf %63, %67 : vector<16x16xf32>
    %c15 = arith.constant 15 : index
    %69 = memref.load %arg2[%c15] : memref<27xf32, #tpu.memory_space<smem>>
    %70 = vector.extract_strided_slice %58 {offsets = [2, 0], sizes = [16, 16], strides = [1, 1]} : vector<18x16xf32> to vector<16x16xf32>
    %71 = vector.broadcast %69 : f32 to vector<16x16xf32>
    %72 = arith.mulf %71, %70 : vector<16x16xf32>
    %73 = arith.addf %68, %72 : vector<16x16xf32>
    %c1_23 = arith.constant 1 : index
    %c0_24 = arith.constant 0 : index
    %c1_25 = arith.constant 1 : index
    %74 = vector.load %arg5[%c1_23, %c0_24, %c1_25] : memref<3x18x18xf32, #tpu.memory_space<vmem>>, vector<1x18x16xf32>
    %75 = vector.shape_cast %74 : vector<1x18x16xf32> to vector<18x16xf32>
    %c10 = arith.constant 10 : index
    %76 = memref.load %arg2[%c10] : memref<27xf32, #tpu.memory_space<smem>>
    %77 = vector.extract_strided_slice %75 {offsets = [0, 0], sizes = [16, 16], strides = [1, 1]} : vector<18x16xf32> to vector<16x16xf32>
    %78 = vector.broadcast %76 : f32 to vector<16x16xf32>
    %79 = arith.mulf %78, %77 : vector<16x16xf32>
    %80 = arith.addf %73, %79 : vector<16x16xf32>
    %c13 = arith.constant 13 : index
    %81 = memref.load %arg2[%c13] : memref<27xf32, #tpu.memory_space<smem>>
    %82 = vector.extract_strided_slice %75 {offsets = [1, 0], sizes = [16, 16], strides = [1, 1]} : vector<18x16xf32> to vector<16x16xf32>
    %83 = vector.broadcast %81 : f32 to vector<16x16xf32>
    %84 = arith.mulf %83, %82 : vector<16x16xf32>
    %85 = arith.addf %80, %84 : vector<16x16xf32>
    %c16 = arith.constant 16 : index
    %86 = memref.load %arg2[%c16] : memref<27xf32, #tpu.memory_space<smem>>
    %87 = vector.extract_strided_slice %75 {offsets = [2, 0], sizes = [16, 16], strides = [1, 1]} : vector<18x16xf32> to vector<16x16xf32>
    %88 = vector.broadcast %86 : f32 to vector<16x16xf32>
    %89 = arith.mulf %88, %87 : vector<16x16xf32>
    %90 = arith.addf %85, %89 : vector<16x16xf32>
    %c1_26 = arith.constant 1 : index
    %c0_27 = arith.constant 0 : index
    %c2_28 = arith.constant 2 : index
    %91 = vector.load %arg5[%c1_26, %c0_27, %c2_28] : memref<3x18x18xf32, #tpu.memory_space<vmem>>, vector<1x18x16xf32>
    %92 = vector.shape_cast %91 : vector<1x18x16xf32> to vector<18x16xf32>
    %c11 = arith.constant 11 : index
    %93 = memref.load %arg2[%c11] : memref<27xf32, #tpu.memory_space<smem>>
    %94 = vector.extract_strided_slice %92 {offsets = [0, 0], sizes = [16, 16], strides = [1, 1]} : vector<18x16xf32> to vector<16x16xf32>
    %95 = vector.broadcast %93 : f32 to vector<16x16xf32>
    %96 = arith.mulf %95, %94 : vector<16x16xf32>
    %97 = arith.addf %90, %96 : vector<16x16xf32>
    %c14 = arith.constant 14 : index
    %98 = memref.load %arg2[%c14] : memref<27xf32, #tpu.memory_space<smem>>
    %99 = vector.extract_strided_slice %92 {offsets = [1, 0], sizes = [16, 16], strides = [1, 1]} : vector<18x16xf32> to vector<16x16xf32>
    %100 = vector.broadcast %98 : f32 to vector<16x16xf32>
    %101 = arith.mulf %100, %99 : vector<16x16xf32>
    %102 = arith.addf %97, %101 : vector<16x16xf32>
    %c17 = arith.constant 17 : index
    %103 = memref.load %arg2[%c17] : memref<27xf32, #tpu.memory_space<smem>>
    %104 = vector.extract_strided_slice %92 {offsets = [2, 0], sizes = [16, 16], strides = [1, 1]} : vector<18x16xf32> to vector<16x16xf32>
    %105 = vector.broadcast %103 : f32 to vector<16x16xf32>
    %106 = arith.mulf %105, %104 : vector<16x16xf32>
    %107 = arith.addf %102, %106 : vector<16x16xf32>
    %c2_29 = arith.constant 2 : index
    %c0_30 = arith.constant 0 : index
    %c0_31 = arith.constant 0 : index
    %108 = vector.load %arg5[%c2_29, %c0_30, %c0_31] : memref<3x18x18xf32, #tpu.memory_space<vmem>>, vector<1x18x16xf32>
    %109 = vector.shape_cast %108 : vector<1x18x16xf32> to vector<18x16xf32>
    %c18 = arith.constant 18 : index
    %110 = memref.load %arg2[%c18] : memref<27xf32, #tpu.memory_space<smem>>
    %111 = vector.extract_strided_slice %109 {offsets = [0, 0], sizes = [16, 16], strides = [1, 1]} : vector<18x16xf32> to vector<16x16xf32>
    %112 = vector.broadcast %110 : f32 to vector<16x16xf32>
    %113 = arith.mulf %112, %111 : vector<16x16xf32>
    %114 = arith.addf %107, %113 : vector<16x16xf32>
    %c21 = arith.constant 21 : index
    %115 = memref.load %arg2[%c21] : memref<27xf32, #tpu.memory_space<smem>>
    %116 = vector.extract_strided_slice %109 {offsets = [1, 0], sizes = [16, 16], strides = [1, 1]} : vector<18x16xf32> to vector<16x16xf32>
    %117 = vector.broadcast %115 : f32 to vector<16x16xf32>
    %118 = arith.mulf %117, %116 : vector<16x16xf32>
    %119 = arith.addf %114, %118 : vector<16x16xf32>
    %c24 = arith.constant 24 : index
    %120 = memref.load %arg2[%c24] : memref<27xf32, #tpu.memory_space<smem>>
    %121 = vector.extract_strided_slice %109 {offsets = [2, 0], sizes = [16, 16], strides = [1, 1]} : vector<18x16xf32> to vector<16x16xf32>
    %122 = vector.broadcast %120 : f32 to vector<16x16xf32>
    %123 = arith.mulf %122, %121 : vector<16x16xf32>
    %124 = arith.addf %119, %123 : vector<16x16xf32>
    %c2_32 = arith.constant 2 : index
    %c0_33 = arith.constant 0 : index
    %c1_34 = arith.constant 1 : index
    %125 = vector.load %arg5[%c2_32, %c0_33, %c1_34] : memref<3x18x18xf32, #tpu.memory_space<vmem>>, vector<1x18x16xf32>
    %126 = vector.shape_cast %125 : vector<1x18x16xf32> to vector<18x16xf32>
    %c19 = arith.constant 19 : index
    %127 = memref.load %arg2[%c19] : memref<27xf32, #tpu.memory_space<smem>>
    %128 = vector.extract_strided_slice %126 {offsets = [0, 0], sizes = [16, 16], strides = [1, 1]} : vector<18x16xf32> to vector<16x16xf32>
    %129 = vector.broadcast %127 : f32 to vector<16x16xf32>
    %130 = arith.mulf %129, %128 : vector<16x16xf32>
    %131 = arith.addf %124, %130 : vector<16x16xf32>
    %c22 = arith.constant 22 : index
    %132 = memref.load %arg2[%c22] : memref<27xf32, #tpu.memory_space<smem>>
    %133 = vector.extract_strided_slice %126 {offsets = [1, 0], sizes = [16, 16], strides = [1, 1]} : vector<18x16xf32> to vector<16x16xf32>
    %134 = vector.broadcast %132 : f32 to vector<16x16xf32>
    %135 = arith.mulf %134, %133 : vector<16x16xf32>
    %136 = arith.addf %131, %135 : vector<16x16xf32>
    %c25 = arith.constant 25 : index
    %137 = memref.load %arg2[%c25] : memref<27xf32, #tpu.memory_space<smem>>
    %138 = vector.extract_strided_slice %126 {offsets = [2, 0], sizes = [16, 16], strides = [1, 1]} : vector<18x16xf32> to vector<16x16xf32>
    %139 = vector.broadcast %137 : f32 to vector<16x16xf32>
    %140 = arith.mulf %139, %138 : vector<16x16xf32>
    %141 = arith.addf %136, %140 : vector<16x16xf32>
    %c2_35 = arith.constant 2 : index
    %c0_36 = arith.constant 0 : index
    %c2_37 = arith.constant 2 : index
    %142 = vector.load %arg5[%c2_35, %c0_36, %c2_37] : memref<3x18x18xf32, #tpu.memory_space<vmem>>, vector<1x18x16xf32>
    %143 = vector.shape_cast %142 : vector<1x18x16xf32> to vector<18x16xf32>
    %c20 = arith.constant 20 : index
    %144 = memref.load %arg2[%c20] : memref<27xf32, #tpu.memory_space<smem>>
    %145 = vector.extract_strided_slice %143 {offsets = [0, 0], sizes = [16, 16], strides = [1, 1]} : vector<18x16xf32> to vector<16x16xf32>
    %146 = vector.broadcast %144 : f32 to vector<16x16xf32>
    %147 = arith.mulf %146, %145 : vector<16x16xf32>
    %148 = arith.addf %141, %147 : vector<16x16xf32>
    %c23 = arith.constant 23 : index
    %149 = memref.load %arg2[%c23] : memref<27xf32, #tpu.memory_space<smem>>
    %150 = vector.extract_strided_slice %143 {offsets = [1, 0], sizes = [16, 16], strides = [1, 1]} : vector<18x16xf32> to vector<16x16xf32>
    %151 = vector.broadcast %149 : f32 to vector<16x16xf32>
    %152 = arith.mulf %151, %150 : vector<16x16xf32>
    %153 = arith.addf %148, %152 : vector<16x16xf32>
    %c26 = arith.constant 26 : index
    %154 = memref.load %arg2[%c26] : memref<27xf32, #tpu.memory_space<smem>>
    %155 = vector.extract_strided_slice %143 {offsets = [2, 0], sizes = [16, 16], strides = [1, 1]} : vector<18x16xf32> to vector<16x16xf32>
    %156 = vector.broadcast %154 : f32 to vector<16x16xf32>
    %157 = arith.mulf %156, %155 : vector<16x16xf32>
    %158 = arith.addf %153, %157 : vector<16x16xf32>
    %c0_38 = arith.constant 0 : index
    %159 = memref.load %arg3[%c0_38] : memref<1xf32, #tpu.memory_space<smem>>
    %160 = vector.broadcast %159 : f32 to vector<16x16xf32>
    %161 = arith.addf %158, %160 : vector<16x16xf32>
    %c0_39 = arith.constant 0 : index
    %c0_40 = arith.constant 0 : index
    %c0_41 = arith.constant 0 : index
    %c0_42 = arith.constant 0 : index
    %162 = vector.load %arg4[%c0_39, %c0_40, %c0_41, %c0_42] : memref<1x1x16x16xf32, #tpu.memory_space<vmem>>, vector<1x1x16x16xf32>
    %163 = vector.shape_cast %162 : vector<1x1x16x16xf32> to vector<16x16xf32>
    %164 = vector.shape_cast %161 : vector<16x16xf32> to vector<1x1x16x16xf32>
    tpu.vector_store %arg4[%c0_39, %c0_40, %c0_41, %c0_42], %164 {strides = array<i32>} : memref<1x1x16x16xf32, #tpu.memory_space<vmem>>, vector<1x1x16x16xf32>,
    return
  }
  func.func @transform_0(%arg0: i32) -> (i32, i32, i32, i32) {
    %c0_i32 = arith.constant 0 : i32
    %c0_i32_0 = arith.constant 0 : i32
    %c0_i32_1 = arith.constant 0 : i32
    %c0_i32_2 = arith.constant 0 : i32
    return %arg0, %c0_i32, %c0_i32_0, %c0_i32_1 : i32, i32, i32, i32
  }
  func.func @transform_1(%arg0: i32) -> i32 {
    %c0_i32 = arith.constant 0 : i32
    %c0_i32_0 = arith.constant 0 : i32
    return %c0_i32 : i32
  }
  func.func @transform_2(%arg0: i32) -> i32 {
    %c0_i32 = arith.constant 0 : i32
    %c0_i32_0 = arith.constant 0 : i32
    return %c0_i32 : i32
  }
  func.func @transform_3(%arg0: i32) -> (i32, i32, i32, i32) {
    %c0_i32 = arith.constant 0 : i32
    %c0_i32_0 = arith.constant 0 : i32
    %c0_i32_1 = arith.constant 0 : i32
    %c0_i32_2 = arith.constant 0 : i32
    return %arg0, %c0_i32, %c0_i32_0, %c0_i32_1 : i32, i32, i32, i32
  }
}

</mosaic_0001>

<llo_original>
// kernel: tpu_custom_call.1
$region0: #{tpu_custom_call.1}
  #allocation0 [shape = 'u32[]', space=smem, size = 0x4, offset = 0x4, fixed_abs, tag = 'smem constant byte address 0x4 - core index']
  #allocation1 [shape = 'u32[144,128]{1,0:T(1,128)}', space=vmem, size = 0x12000, scoped, tag = 'internal scratch']
  #allocation2 [shape = 'f32[3,18,18]{2,1,0:T(8,128)}', space=vmem, size = 0x9000, scoped, tag = 'scratch operand']
  #allocation3 [shape = 'f32[1]{0:T(128)S(6)}', space=smem, size = 0x200, scoped, tag = 'scoped memory for tpu_custom_call.1']
  %s0 = inlined_call_operand.hbm [shape: f32[2,3,16,16], index: 0, kind: input, shape index: {}]
  %s1 = inlined_call_operand.vmem [shape: f32[27], index: 1, kind: input, shape index: {}]
  %s2 = inlined_call_operand.<no memory space> [shape: f32[1], index: 2, kind: input, shape index: {}]
  %s3 = inlined_call_operand.hbm [shape: f32[2,1,16,16], index: 3, kind: output, shape index: {}]
  %s4 = sld [smem:[#allocation0]]
  $region53: #{tpu_custom_call.1} parent=0
    _
  %s6 = ssub.s32 1, %s4
  %s7 = scalar_select 0, %s6, %s4
  %8 = sst [smem:[#allocation3]] %s2
  $region1: #{tpu_custom_call.1} parent=0
    #allocation4 [shape = 'u8[49152]{0}', space=vmem, size = 0xc000, scoped, tag = 'input window, operand 0']
    #allocation5 [shape = 's32[2]{0}', space=sflag, size = 0x8, scoped, tag = 'scoped memory for tpu_custom_call.1']
    #allocation6 [shape = 's32[2]{0}', space=sflag, size = 0x8, scoped, tag = 'scoped memory for tpu_custom_call.1']
    #allocation7 [shape = 's32[2]{0}', space=sflag, size = 0x8, scoped, tag = 'scoped memory for tpu_custom_call.1']
    #allocation8 [shape = 'u8[512]{0}', space=smem, size = 0x200, scoped, tag = 'input window, operand 1, single buffered']
    #allocation9 [shape = 'u8[16384]{0}', space=vmem, size = 0x4000, scoped, tag = 'output window, operand 0']
    %9 = vsyncpa [#allocation5], 0
    %s10 = scalar_lea.sflag [#allocation5], 1
    %11 = vsyncpa %s10, 0
    %12 = vsyncpa [#allocation7], 0
    %13 = vsyncpa [#allocation6], 0
    %s14 = scalar_lea.sflag [#allocation6], 1
    %15 = vsyncpa %s14, 0
    loop: start=0, step=1, limit=4
    $region2: #{tpu_custom_call.1} parent=1 // loop_pre_header
      _
    $region3: #{tpu_custom_call.1} parent=1 // loop_header
      %s17 = sphi 0, %s21
      %p18 = scmp.ge.s32.totalorder %s17, 4
      %s27 = sphi 0, %s29
      %s30 = sphi 0, %s27
      %s31 = sphi 0, %s30
      %s47 = sphi 0, %s31
      %s51 = sphi 0, %s51
      %s53 = sphi 0, %s51
      %s54 = sphi 0, %s53
      %s68 = sphi 0, %s54
      %s72 = sphi 0, %s72
      %s74 = sphi 0, %s72
      %s75 = sphi 0, %s74
      %s89 = sphi 0, %s75
      %s95 = sphi 0, %s97
      %s98 = sphi 0, %s95
      %s99 = sphi 0, %s98
      %s115 = sphi 0, %s99
    $region4: #{tpu_custom_call.1} parent=1 // loop_header_branch
      %20 = sbr.rel (%p18) target = $region8
    $region5: #{tpu_custom_call.1} parent=1 // loop_body
      %s22 = ssub.s32 %s17, 1
      %s23 = ssub.s32 %s17, 2
      %s24 = sadd.s32 %s17, 1
      %s25 = ssub.s32 %s17, %s24
      %p26 = scmp.eq.s32.totalorder %s25, 0
      %s28 = sadd.s32 %s27, 1
      %s29 = scalar_select %p26, %s27, %s28
      %p32 = pneg %p26
      %p33 = scmp.eq.s32.totalorder %s17, 1
      %p34 = por %p32, %p33
      %p35 = scmp.ne.s32.totalorder %s27, %s30
      %p36 = scmp.eq.s32.totalorder %s17, 0
      %p37 = por %p35, %p36
      %p38 = scmp.ne.s32.totalorder %s27, %s30
      %p39 = scmp.eq.s32.totalorder %s22, 1
      %p40 = por %p38, %p39
      %p41 = scmp.ne.s32.totalorder %s30, %s31
      %p42 = scmp.eq.s32.totalorder %s22, 0
      %p43 = por %p41, %p42
      %p44 = scmp.ne.s32.totalorder %s30, %s31
      %p45 = scmp.eq.s32.totalorder %s23, 1
      %p46 = por %p44, %p45
      %p48 = scmp.ne.s32.totalorder %s31, %s47
      %p49 = scmp.eq.s32.totalorder %s23, 0
      %p50 = por %p48, %p49
      %s52 = sadd.s32 %s51, 1
      %p55 = scmp.eq.s32.totalorder %s17, 1
      %p56 = scmp.ne.s32.totalorder %s51, %s53
      %p57 = scmp.eq.s32.totalorder %s17, 0
      %p58 = por %p56, %p57
      %p59 = scmp.ne.s32.totalorder %s51, %s53
      %p60 = scmp.eq.s32.totalorder %s22, 1
      %p61 = por %p59, %p60
      %p62 = scmp.ne.s32.totalorder %s53, %s54
      %p63 = scmp.eq.s32.totalorder %s22, 0
      %p64 = por %p62, %p63
      %p65 = scmp.ne.s32.totalorder %s53, %s54
      %p66 = scmp.eq.s32.totalorder %s23, 1
      %p67 = por %p65, %p66
      %p69 = scmp.ne.s32.totalorder %s54, %s68
      %p70 = scmp.eq.s32.totalorder %s23, 0
      %p71 = por %p69, %p70
      %s73 = sadd.s32 %s72, 1
      %p76 = scmp.eq.s32.totalorder %s17, 1
      %p77 = scmp.ne.s32.totalorder %s72, %s74
      %p78 = scmp.eq.s32.totalorder %s17, 0
      %p79 = por %p77, %p78
      %p80 = scmp.ne.s32.totalorder %s72, %s74
      %p81 = scmp.eq.s32.totalorder %s22, 1
      %p82 = por %p80, %p81
      %p83 = scmp.ne.s32.totalorder %s74, %s75
      %p84 = scmp.eq.s32.totalorder %s22, 0
      %p85 = por %p83, %p84
      %p86 = scmp.ne.s32.totalorder %s74, %s75
      %p87 = scmp.eq.s32.totalorder %s23, 1
      %p88 = por %p86, %p87
      %p90 = scmp.ne.s32.totalorder %s75, %s89
      %p91 = scmp.eq.s32.totalorder %s23, 0
      %p92 = por %p90, %p91
      %s93 = ssub.s32 %s17, %s24
      %p94 = scmp.eq.s32.totalorder %s93, 0
      %s96 = sadd.s32 %s95, 1
      %s97 = scalar_select %p94, %s95, %s96
      %p100 = pneg %p94
      %p101 = scmp.eq.s32.totalorder %s17, 1
      %p102 = por %p100, %p101
      %p103 = scmp.ne.s32.totalorder %s95, %s98
      %p104 = scmp.eq.s32.totalorder %s17, 0
      %p105 = por %p103, %p104
      %p106 = scmp.ne.s32.totalorder %s95, %s98
      %p107 = scmp.eq.s32.totalorder %s22, 1
      %p108 = por %p106, %p107
      %p109 = scmp.ne.s32.totalorder %s98, %s99
      %p110 = scmp.eq.s32.totalorder %s22, 0
      %p111 = por %p109, %p110
      %p112 = scmp.ne.s32.totalorder %s98, %s99
      %p113 = scmp.eq.s32.totalorder %s23, 1
      %p114 = por %p112, %p113
      %p116 = scmp.ne.s32.totalorder %s99, %s115
      %p117 = scmp.eq.s32.totalorder %s23, 0
      %p118 = por %p116, %p117
      %p119 = scmp.le.s32.totalorder 1, %s17
      %p120 = scmp.lt.s32.totalorder %s17, 3
      %p121 = pnand %p119, %p120
      %p122 = pneg %p121
      // Predicated region
      $region9: #{tpu_custom_call.1} parent=5 // pred_check
        _
      $region10: #{tpu_custom_call.1} parent=5 // pred_check_branch
        %124 = sbr.rel (%p121) target = $region12
      $region11: #{tpu_custom_call.1} parent=5 // pred_region
        %s125 = ssub.s32 %s17, 1
        // Predicated region
        $region13: #{tpu_custom_call.1} parent=11 // pred_check
          %p126 = pneg %p64
        $region14: #{tpu_custom_call.1} parent=11 // pred_check_branch
          %128 = sbr.rel (%p126) target = $region16
        $region15: #{tpu_custom_call.1} parent=11 // pred_region
          %s130 = ssub.s32 16, 16
          %131 = vsyncadd [#allocation7], %s130
          %s133 = sshll.u32 %s1, 4
          %s134 = int_to_ptr.vmem [resolvable:$true] %s133
          %136 = dma.vmem_to_smem %s134, 16, [#allocation8], [#allocation7]
        $region16: #{tpu_custom_call.1} parent=11 // pred_fallthru
          _
        // Predicated region
        $region17: #{tpu_custom_call.1} parent=11 // pred_check
          %p137 = pneg %p85
        $region18: #{tpu_custom_call.1} parent=11 // pred_check_branch
          %139 = sbr.rel (%p137) target = $region20
        $region19: #{tpu_custom_call.1} parent=11 // pred_region
          _
        $region20: #{tpu_custom_call.1} parent=11 // pred_fallthru
          _
      $region12: #{tpu_custom_call.1} parent=5 // pred_fallthru
        _
      %p140 = scmp.lt.s32.totalorder %s17, 2
      // Predicated region
      $region21: #{tpu_custom_call.1} parent=5 // pred_check
        %p141 = pneg %p140
      $region22: #{tpu_custom_call.1} parent=5 // pred_check_branch
        %143 = sbr.rel (%p141) target = $region24
      $region23: #{tpu_custom_call.1} parent=5 // pred_region
        // Predicated region
        $region25: #{tpu_custom_call.1} parent=23 // pred_check
          %p144 = pneg %p37
        $region26: #{tpu_custom_call.1} parent=23 // pred_check_branch
          %146 = sbr.rel (%p144) target = $region28
        $region27: #{tpu_custom_call.1} parent=23 // pred_region
          %s147 = sand.u32 %s27, 1
          %s148 = scalar_lea.sflag [#allocation5], %s147
          %s149 = sand.u32 %s27, 1
          %s150 = smul.addr %s149, 48
          %s151 = scalar_lea.vmem [#allocation4], %s150
          %s153 = ssub.s32 768, 768
          %154 = vsyncadd %s148, %s153
          %s155 = smul.addr %s17, 6
          %s156 = smul.addr %s155, 128
          %s157 = scalar_lea.hbm %s0, %s156
          %s158 = sshll.u32 %s151, 4
          %s159 = int_to_ptr.vmem [resolvable:$true] %s158
          %164 = dma.hbm_to_vmem [thread:$0]  %s157, 768, %s159, %s148, 128, 128, 8
        $region28: #{tpu_custom_call.1} parent=23 // pred_fallthru
          _
      $region24: #{tpu_custom_call.1} parent=5 // pred_fallthru
        _
      %p165 = scmp.le.s32.totalorder 1, %s17
      %p166 = scmp.lt.s32.totalorder %s17, 3
      %p167 = pnand %p165, %p166
      %p168 = pneg %p167
      // Predicated region
      $region29: #{tpu_custom_call.1} parent=5 // pred_check
        _
      $region30: #{tpu_custom_call.1} parent=5 // pred_check_branch
        %170 = sbr.rel (%p167) target = $region32
      $region31: #{tpu_custom_call.1} parent=5 // pred_region
        %s171 = ssub.s32 %s17, 1
        %s172 = sand.u32 %s30, 1
        %s173 = scalar_lea.sflag [#allocation5], %s172
        %s174 = sand.u32 %s30, 1
        %s175 = smul.addr %s174, 48
        %s176 = scalar_lea.vmem [#allocation4], %s175
        // Predicated region
        $region33: #{tpu_custom_call.1} parent=31 // pred_check
          %p177 = pneg %p43
        $region34: #{tpu_custom_call.1} parent=31 // pred_check_branch
          %179 = sbr.rel (%p177) target = $region36
        $region35: #{tpu_custom_call.1} parent=31 // pred_region
          %180 = dma.done %s173, 768
        $region36: #{tpu_custom_call.1} parent=31 // pred_fallthru
          _
        // Predicated region
        $region37: #{tpu_custom_call.1} parent=31 // pred_check
          %p181 = pneg %p64
        $region38: #{tpu_custom_call.1} parent=31 // pred_check_branch
          %183 = sbr.rel (%p181) target = $region40
        $region39: #{tpu_custom_call.1} parent=31 // pred_region
          %184 = dma.done [#allocation7], 16
        $region40: #{tpu_custom_call.1} parent=31 // pred_fallthru
          _
        %185 = sfence
        %s186 = sand.u32 %s30, 1
        %s187 = scalar_lea.sflag [#allocation5], %s186
        %s188 = sand.u32 %s30, 1
        %s189 = smul.addr %s188, 48
        %s190 = scalar_lea.vmem [#allocation4], %s189
        %p191 = pneg %p43
        %p192 = pneg %p40
        %p193 = pneg %p64
        %p194 = pneg %p61
        %p195 = pneg %p85
        %p196 = pneg %p82
        %p197 = pneg %p111
        %p198 = pneg %p108
        %s199 = sand.u32 %s98, 1
        %s200 = scalar_lea.sflag [#allocation6], %s199
        %s201 = sand.u32 %s98, 1
        %s202 = smul.addr %s201, 16
        %s203 = scalar_lea.vmem [#allocation9], %s202
        %vm204 = vcmask 146432
        %205 = vst.msk [vmem:[#allocation2] sm:$0xff] %vm204, 0.0
        %206 = vst.msk [vmem:[#allocation2 + $0x8] sm:$0xff] %vm204, 0.0
        %vm207 = vcmask 140288
        %208 = vst.msk [vmem:[#allocation2 + $0x10] sm:$0x3] %vm207, 0.0
        %209 = vst.msk [vmem:[#allocation2 + $0x18] sm:$0xff] %vm204, 0.0
        %210 = vst.msk [vmem:[#allocation2 + $0x20] sm:$0xff] %vm204, 0.0
        %211 = vst.msk [vmem:[#allocation2 + $0x28] sm:$0x3] %vm207, 0.0
        %212 = vst.msk [vmem:[#allocation2 + $0x30] sm:$0xff] %vm204, 0.0
        %213 = vst.msk [vmem:[#allocation2 + $0x38] sm:$0xff] %vm204, 0.0
        %214 = vst.msk [vmem:[#allocation2 + $0x40] sm:$0x3] %vm207, 0.0
        %v215 = vld [vmem:[%s176] sm:$0xff]
        %v216 = vld [vmem:[%s176 + $0x8] sm:$0xff]
        %v217 = vld [vmem:[%s176 + $0x10] sm:$0xff]
        %v218 = vld [vmem:[%s176 + $0x18] sm:$0xff]
        %v219 = vld [vmem:[%s176 + $0x20] sm:$0xff]
        %v220 = vld [vmem:[%s176 + $0x28] sm:$0xff]
        %227 = vrot.lane.b32.xlu0 %v215, 1
        %v228 = vpop.permute.xlu0 %227
        %229 = vrot.lane.b32.xlu0 %v216, 1
        %v230 = vpop.permute.xlu0 %229
        %231 = vrot.lane.b32.xlu0 %v217, 1
        %v232 = vpop.permute.xlu0 %231
        %233 = vrot.lane.b32.xlu0 %v218, 1
        %v234 = vpop.permute.xlu0 %233
        %235 = vrot.lane.b32.xlu0 %v219, 1
        %v236 = vpop.permute.xlu0 %235
        %237 = vrot.lane.b32.xlu0 %v220, 1
        %v238 = vpop.permute.xlu0 %237
        %vm245 = vcmask 138248
        %246 = vst.msk [vmem:[#allocation2 + $0x1] sm:$0xff] %vm245, %v228
        %247 = vst.msk [vmem:[#allocation2 + $0x9] sm:$0xff] %vm245, %v230
        %248 = vst.msk [vmem:[#allocation2 + $0x19] sm:$0xff] %vm245, %v232
        %249 = vst.msk [vmem:[#allocation2 + $0x21] sm:$0xff] %vm245, %v234
        %250 = vst.msk [vmem:[#allocation2 + $0x31] sm:$0xff] %vm245, %v236
        %251 = vst.msk [vmem:[#allocation2 + $0x39] sm:$0xff] %vm245, %v238
        %v252 = vld [vmem:[#allocation2] sm:$0xff]
        %v253 = vld [vmem:[#allocation2 + $0x8] sm:$0xff]
        %v254 = vld [vmem:[#allocation2 + $0x10] sm:$0x3]
        %s255 = sld [smem:[#allocation8]]
        %v256 = vstv %s255
        %v257 = vmul.f32 %v256, %v252
        %v258 = vmul.f32 %v256, %v253
        %v259 = vadd.f32 %v257, 0.0
        %v260 = vadd.f32 %v258, 0.0
        %s261 = sld [smem:[#allocation8 + $0x3]]
        %v262 = vstv %s261
        %v263 = vmul.f32 %v262, %v252
        %v264 = vmul.f32 %v262, %v253
        %v265 = vmul.f32 %v262, %v254
        %vm269 = vcmask 1046528
        %v270 = vrot.slane %v263, 1
        %v271 = vrot.slane %v264, 1
        %v272 = vsel %vm269, %v270, %v271
        %v273 = vrot.slane %v265, 1
        %v274 = vsel %vm269, %v271, %v273
        %v277 = vadd.f32 %v259, %v272
        %v278 = vadd.f32 %v260, %v274
        %s279 = sld [smem:[#allocation8 + $0x6]]
        %v280 = vstv %s279
        %v281 = vmul.f32 %v280, %v252
        %v282 = vmul.f32 %v280, %v253
        %v283 = vmul.f32 %v280, %v254
        %vm287 = vcmask 1045504
        %v288 = vrot.slane %v281, 2
        %v289 = vrot.slane %v282, 2
        %v290 = vsel %vm287, %v288, %v289
        %v291 = vrot.slane %v283, 2
        %v292 = vsel %vm287, %v289, %v291
        %v295 = vadd.f32 %v277, %v290
        %v296 = vadd.f32 %v278, %v292
        %s297 = sld [smem:[#allocation8 + $0x1]]
        %v298 = vstv %s297
        %v299 = vmul.f32 %v298, %v252
        %v300 = vmul.f32 %v298, %v253
        %303 = vrot.lane.b32.xlu0 %v299, 127
        %v304 = vpop.permute.xlu0 %303
        %305 = vrot.lane.b32.xlu0 %v300, 127
        %v306 = vpop.permute.xlu0 %305
        %v309 = vadd.f32 %v295, %v304
        %v310 = vadd.f32 %v296, %v306
        %s311 = sld [smem:[#allocation8 + $0x4]]
        %v312 = vstv %s311
        %v313 = vmul.f32 %v312, %v252
        %v314 = vmul.f32 %v312, %v253
        %v315 = vmul.f32 %v312, %v254
        %v319 = vrot.slane %v313, 1
        %v320 = vrot.slane %v314, 1
        %v321 = vsel %vm269, %v319, %v320
        %v322 = vrot.slane %v315, 1
        %v323 = vsel %vm269, %v320, %v322
        %324 = vrot.lane.b32.xlu0 %v321, 127
        %v325 = vpop.permute.xlu0 %324
        %326 = vrot.lane.b32.xlu0 %v323, 127
        %v327 = vpop.permute.xlu0 %326
        %v330 = vadd.f32 %v309, %v325
        %v331 = vadd.f32 %v310, %v327
        %s332 = sld [smem:[#allocation8 + $0x7]]
        %v333 = vstv %s332
        %v334 = vmul.f32 %v333, %v252
        %v335 = vmul.f32 %v333, %v253
        %v336 = vmul.f32 %v333, %v254
        %v340 = vrot.slane %v334, 2
        %v341 = vrot.slane %v335, 2
        %v342 = vsel %vm287, %v340, %v341
        %v343 = vrot.slane %v336, 2
        %v344 = vsel %vm287, %v341, %v343
        %345 = vrot.lane.b32.xlu0 %v342, 127
        %v346 = vpop.permute.xlu0 %345
        %347 = vrot.lane.b32.xlu0 %v344, 127
        %v348 = vpop.permute.xlu0 %347
        %v351 = vadd.f32 %v330, %v346
        %v352 = vadd.f32 %v331, %v348
        %s353 = sld [smem:[#allocation8 + $0x2]]
        %v354 = vstv %s353
        %v355 = vmul.f32 %v354, %v252
        %v356 = vmul.f32 %v354, %v253
        %359 = vrot.lane.b32.xlu0 %v355, 126
        %v360 = vpop.permute.xlu0 %359
        %361 = vrot.lane.b32.xlu0 %v356, 126
        %v362 = vpop.permute.xlu0 %361
        %v365 = vadd.f32 %v351, %v360
        %v366 = vadd.f32 %v352, %v362
        %s367 = sld [smem:[#allocation8 + $0x5]]
        %v368 = vstv %s367
        %v369 = vmul.f32 %v368, %v252
        %v370 = vmul.f32 %v368, %v253
        %v371 = vmul.f32 %v368, %v254
        %v375 = vrot.slane %v369, 1
        %v376 = vrot.slane %v370, 1
        %v377 = vsel %vm269, %v375, %v376
        %v378 = vrot.slane %v371, 1
        %v379 = vsel %vm269, %v376, %v378
        %380 = vrot.lane.b32.xlu0 %v377, 126
        %v381 = vpop.permute.xlu0 %380
        %382 = vrot.lane.b32.xlu0 %v379, 126
        %v383 = vpop.permute.xlu0 %382
        %v386 = vadd.f32 %v365, %v381
        %v387 = vadd.f32 %v366, %v383
        %s388 = sld [smem:[#allocation8 + $0x8]]
        %v389 = vstv %s388
        %v390 = vmul.f32 %v389, %v252
        %v391 = vmul.f32 %v389, %v253
        %v392 = vmul.f32 %v389, %v254
        %v396 = vrot.slane %v390, 2
        %v397 = vrot.slane %v391, 2
        %v398 = vsel %vm287, %v396, %v397
        %v399 = vrot.slane %v392, 2
        %v400 = vsel %vm287, %v397, %v399
        %401 = vrot.lane.b32.xlu0 %v398, 126
        %v402 = vpop.permute.xlu0 %401
        %403 = vrot.lane.b32.xlu0 %v400, 126
        %v404 = vpop.permute.xlu0 %403
        %v407 = vadd.f32 %v386, %v402
        %v408 = vadd.f32 %v387, %v404
        %s409 = scalar_lea.vmem [#allocation2], 24
        %v410 = vld [vmem:[%s409] sm:$0xff]
        %v411 = vld [vmem:[%s409 + $0x8] sm:$0xff]
        %v412 = vld [vmem:[%s409 + $0x10] sm:$0x3]
        %s413 = sld [smem:[#allocation8 + $0x9]]
        %v414 = vstv %s413
        %v415 = vmul.f32 %v414, %v410
        %v416 = vmul.f32 %v414, %v411
        %v417 = vadd.f32 %v407, %v415
        %v418 = vadd.f32 %v408, %v416
        %s419 = sld [smem:[#allocation8 + $0xc]]
        %v420 = vstv %s419
        %v421 = vmul.f32 %v420, %v410
        %v422 = vmul.f32 %v420, %v411
        %v423 = vmul.f32 %v420, %v412
        %v427 = vrot.slane %v421, 1
        %v428 = vrot.slane %v422, 1
        %v429 = vsel %vm269, %v427, %v428
        %v430 = vrot.slane %v423, 1
        %v431 = vsel %vm269, %v428, %v430
        %v434 = vadd.f32 %v417, %v429
        %v435 = vadd.f32 %v418, %v431
        %s436 = sld [smem:[#allocation8 + $0xf]]
        %v437 = vstv %s436
        %v438 = vmul.f32 %v437, %v410
        %v439 = vmul.f32 %v437, %v411
        %v440 = vmul.f32 %v437, %v412
        %v444 = vrot.slane %v438, 2
        %v445 = vrot.slane %v439, 2
        %v446 = vsel %vm287, %v444, %v445
        %v447 = vrot.slane %v440, 2
        %v448 = vsel %vm287, %v445, %v447
        %v451 = vadd.f32 %v434, %v446
        %v452 = vadd.f32 %v435, %v448
        %s453 = sld [smem:[#allocation8 + $0xa]]
        %v454 = vstv %s453
        %v455 = vmul.f32 %v454, %v410
        %v456 = vmul.f32 %v454, %v411
        %459 = vrot.lane.b32.xlu0 %v455, 127
        %v460 = vpop.permute.xlu0 %459
        %461 = vrot.lane.b32.xlu0 %v456, 127
        %v462 = vpop.permute.xlu0 %461
        %v465 = vadd.f32 %v451, %v460
        %v466 = vadd.f32 %v452, %v462
        %s467 = sld [smem:[#allocation8 + $0xd]]
        %v468 = vstv %s467
        %v469 = vmul.f32 %v468, %v410
        %v470 = vmul.f32 %v468, %v411
        %v471 = vmul.f32 %v468, %v412
        %v475 = vrot.slane %v469, 1
        %v476 = vrot.slane %v470, 1
        %v477 = vsel %vm269, %v475, %v476
        %v478 = vrot.slane %v471, 1
        %v479 = vsel %vm269, %v476, %v478
        %480 = vrot.lane.b32.xlu0 %v477, 127
        %v481 = vpop.permute.xlu0 %480
        %482 = vrot.lane.b32.xlu0 %v479, 127
        %v483 = vpop.permute.xlu0 %482
        %v486 = vadd.f32 %v465, %v481
        %v487 = vadd.f32 %v466, %v483
        %s488 = sld [smem:[#allocation8 + $0x10]]
        %v489 = vstv %s488
        %v490 = vmul.f32 %v489, %v410
        %v491 = vmul.f32 %v489, %v411
        %v492 = vmul.f32 %v489, %v412
        %v496 = vrot.slane %v490, 2
        %v497 = vrot.slane %v491, 2
        %v498 = vsel %vm287, %v496, %v497
        %v499 = vrot.slane %v492, 2
        %v500 = vsel %vm287, %v497, %v499
        %501 = vrot.lane.b32.xlu0 %v498, 127
        %v502 = vpop.permute.xlu0 %501
        %503 = vrot.lane.b32.xlu0 %v500, 127
        %v504 = vpop.permute.xlu0 %503
        %v507 = vadd.f32 %v486, %v502
        %v508 = vadd.f32 %v487, %v504
        %s509 = sld [smem:[#allocation8 + $0xb]]
        %v510 = vstv %s509
        %v511 = vmul.f32 %v510, %v410
        %v512 = vmul.f32 %v510, %v411
        %515 = vrot.lane.b32.xlu0 %v511, 126
        %v516 = vpop.permute.xlu0 %515
        %517 = vrot.lane.b32.xlu0 %v512, 126
        %v518 = vpop.permute.xlu0 %517
        %v521 = vadd.f32 %v507, %v516
        %v522 = vadd.f32 %v508, %v518
        %s523 = sld [smem:[#allocation8 + $0xe]]
        %v524 = vstv %s523
        %v525 = vmul.f32 %v524, %v410
        %v526 = vmul.f32 %v524, %v411
        %v527 = vmul.f32 %v524, %v412
        %v531 = vrot.slane %v525, 1
        %v532 = vrot.slane %v526, 1
        %v533 = vsel %vm269, %v531, %v532
        %v534 = vrot.slane %v527, 1
        %v535 = vsel %vm269, %v532, %v534
        %536 = vrot.lane.b32.xlu0 %v533, 126
        %v537 = vpop.permute.xlu0 %536
        %538 = vrot.lane.b32.xlu0 %v535, 126
        %v539 = vpop.permute.xlu0 %538
        %v542 = vadd.f32 %v521, %v537
        %v543 = vadd.f32 %v522, %v539
        %s544 = sld [smem:[#allocation8 + $0x11]]
        %v545 = vstv %s544
        %v546 = vmul.f32 %v545, %v410
        %v547 = vmul.f32 %v545, %v411
        %v548 = vmul.f32 %v545, %v412
        %v552 = vrot.slane %v546, 2
        %v553 = vrot.slane %v547, 2
        %v554 = vsel %vm287, %v552, %v553
        %v555 = vrot.slane %v548, 2
        %v556 = vsel %vm287, %v553, %v555
        %557 = vrot.lane.b32.xlu0 %v554, 126
        %v558 = vpop.permute.xlu0 %557
        %559 = vrot.lane.b32.xlu0 %v556, 126
        %v560 = vpop.permute.xlu0 %559
        %v563 = vadd.f32 %v542, %v558
        %v564 = vadd.f32 %v543, %v560
        %s565 = scalar_lea.vmem [#allocation2], 48
        %v566 = vld [vmem:[%s565] sm:$0xff]
        %v567 = vld [vmem:[%s565 + $0x8] sm:$0xff]
        %v568 = vld [vmem:[%s565 + $0x10] sm:$0x3]
        %s569 = sld [smem:[#allocation8 + $0x12]]
        %v570 = vstv %s569
        %v571 = vmul.f32 %v570, %v566
        %v572 = vmul.f32 %v570, %v567
        %v573 = vadd.f32 %v563, %v571
        %v574 = vadd.f32 %v564, %v572
        %s575 = sld [smem:[#allocation8 + $0x15]]
        %v576 = vstv %s575
        %v577 = vmul.f32 %v576, %v566
        %v578 = vmul.f32 %v576, %v567
        %v579 = vmul.f32 %v576, %v568
        %v583 = vrot.slane %v577, 1
        %v584 = vrot.slane %v578, 1
        %v585 = vsel %vm269, %v583, %v584
        %v586 = vrot.slane %v579, 1
        %v587 = vsel %vm269, %v584, %v586
        %v590 = vadd.f32 %v573, %v585
        %v591 = vadd.f32 %v574, %v587
        %s592 = sld [smem:[#allocation8 + $0x18]]
        %v593 = vstv %s592
        %v594 = vmul.f32 %v593, %v566
        %v595 = vmul.f32 %v593, %v567
        %v596 = vmul.f32 %v593, %v568
        %v600 = vrot.slane %v594, 2
        %v601 = vrot.slane %v595, 2
        %v602 = vsel %vm287, %v600, %v601
        %v603 = vrot.slane %v596, 2
        %v604 = vsel %vm287, %v601, %v603
        %v607 = vadd.f32 %v590, %v602
        %v608 = vadd.f32 %v591, %v604
        %s609 = sld [smem:[#allocation8 + $0x13]]
        %v610 = vstv %s609
        %v611 = vmul.f32 %v610, %v566
        %v612 = vmul.f32 %v610, %v567
        %615 = vrot.lane.b32.xlu0 %v611, 127
        %v616 = vpop.permute.xlu0 %615
        %617 = vrot.lane.b32.xlu0 %v612, 127
        %v618 = vpop.permute.xlu0 %617
        %v621 = vadd.f32 %v607, %v616
        %v622 = vadd.f32 %v608, %v618
        %s623 = sld [smem:[#allocation8 + $0x16]]
        %v624 = vstv %s623
        %v625 = vmul.f32 %v624, %v566
        %v626 = vmul.f32 %v624, %v567
        %v627 = vmul.f32 %v624, %v568
        %v631 = vrot.slane %v625, 1
        %v632 = vrot.slane %v626, 1
        %v633 = vsel %vm269, %v631, %v632
        %v634 = vrot.slane %v627, 1
        %v635 = vsel %vm269, %v632, %v634
        %636 = vrot.lane.b32.xlu0 %v633, 127
        %v637 = vpop.permute.xlu0 %636
        %638 = vrot.lane.b32.xlu0 %v635, 127
        %v639 = vpop.permute.xlu0 %638
        %v642 = vadd.f32 %v621, %v637
        %v643 = vadd.f32 %v622, %v639
        %s644 = sld [smem:[#allocation8 + $0x19]]
        %v645 = vstv %s644
        %v646 = vmul.f32 %v645, %v566
        %v647 = vmul.f32 %v645, %v567
        %v648 = vmul.f32 %v645, %v568
        %v652 = vrot.slane %v646, 2
        %v653 = vrot.slane %v647, 2
        %v654 = vsel %vm287, %v652, %v653
        %v655 = vrot.slane %v648, 2
        %v656 = vsel %vm287, %v653, %v655
        %657 = vrot.lane.b32.xlu0 %v654, 127
        %v658 = vpop.permute.xlu0 %657
        %659 = vrot.lane.b32.xlu0 %v656, 127
        %v660 = vpop.permute.xlu0 %659
        %v663 = vadd.f32 %v642, %v658
        %v664 = vadd.f32 %v643, %v660
        %s665 = sld [smem:[#allocation8 + $0x14]]
        %v666 = vstv %s665
        %v667 = vmul.f32 %v666, %v566
        %v668 = vmul.f32 %v666, %v567
        %671 = vrot.lane.b32.xlu0 %v667, 126
        %v672 = vpop.permute.xlu0 %671
        %673 = vrot.lane.b32.xlu0 %v668, 126
        %v674 = vpop.permute.xlu0 %673
        %v677 = vadd.f32 %v663, %v672
        %v678 = vadd.f32 %v664, %v674
        %s679 = sld [smem:[#allocation8 + $0x17]]
        %v680 = vstv %s679
        %v681 = vmul.f32 %v680, %v566
        %v682 = vmul.f32 %v680, %v567
        %v683 = vmul.f32 %v680, %v568
        %v687 = vrot.slane %v681, 1
        %v688 = vrot.slane %v682, 1
        %v689 = vsel %vm269, %v687, %v688
        %v690 = vrot.slane %v683, 1
        %v691 = vsel %vm269, %v688, %v690
        %692 = vrot.lane.b32.xlu0 %v689, 126
        %v693 = vpop.permute.xlu0 %692
        %694 = vrot.lane.b32.xlu0 %v691, 126
        %v695 = vpop.permute.xlu0 %694
        %v698 = vadd.f32 %v677, %v693
        %v699 = vadd.f32 %v678, %v695
        %s700 = sld [smem:[#allocation8 + $0x1a]]
        %v701 = vstv %s700
        %v702 = vmul.f32 %v701, %v566
        %v703 = vmul.f32 %v701, %v567
        %v704 = vmul.f32 %v701, %v568
        %v708 = vrot.slane %v702, 2
        %v709 = vrot.slane %v703, 2
        %v710 = vsel %vm287, %v708, %v709
        %v711 = vrot.slane %v704, 2
        %v712 = vsel %vm287, %v709, %v711
        %713 = vrot.lane.b32.xlu0 %v710, 126
        %v714 = vpop.permute.xlu0 %713
        %715 = vrot.lane.b32.xlu0 %v712, 126
        %v716 = vpop.permute.xlu0 %715
        %v719 = vadd.f32 %v698, %v714
        %v720 = vadd.f32 %v699, %v716
        %s721 = sld [smem:[#allocation3]]
        %v722 = vstv %s721
        %v723 = vadd.f32 %v719, %v722
        %v724 = vadd.f32 %v720, %v722
        %vm725 = vcmask 130048
        %726 = vst.msk [vmem:[%s203] sm:$0xff] %vm725, %v723
        %727 = vst.msk [vmem:[%s203 + $0x8] sm:$0xff] %vm725, %v724
        %s728 = sand.u32 %s98, 1
        %s729 = scalar_lea.sflag [#allocation6], %s728
        %s730 = sand.u32 %s98, 1
        %s731 = smul.addr %s730, 16
        %s732 = scalar_lea.vmem [#allocation9], %s731
        // Predicated region
        $region41: #{tpu_custom_call.1} parent=31 // pred_check
          %p733 = pneg %p108
        $region42: #{tpu_custom_call.1} parent=31 // pred_check_branch
          %735 = sbr.rel (%p733) target = $region44
        $region43: #{tpu_custom_call.1} parent=31 // pred_region
          %s737 = ssub.s32 256, 256
          %738 = vsyncadd %s729, %s737
          %s739 = smul.addr %s22, 2
          %s740 = smul.addr %s739, 128
          %s741 = scalar_lea.hbm %s3, %s740
          %s742 = sshll.u32 %s732, 4
          %s743 = int_to_ptr.vmem [resolvable:$true] %s742
          %748 = dma.vmem_to_hbm [thread:$0]  %s743, 256, %s741, %s729, 128, 128, 8
        $region44: #{tpu_custom_call.1} parent=31 // pred_fallthru
          _
      $region32: #{tpu_custom_call.1} parent=5 // pred_fallthru
        _
      %p749 = scmp.le.s32.totalorder 2, %s17
      // Predicated region
      $region45: #{tpu_custom_call.1} parent=5 // pred_check
        %p750 = pneg %p749
      $region46: #{tpu_custom_call.1} parent=5 // pred_check_branch
        %752 = sbr.rel (%p750) target = $region48
      $region47: #{tpu_custom_call.1} parent=5 // pred_region
        %s753 = ssub.s32 %s17, 2
        // Predicated region
        $region49: #{tpu_custom_call.1} parent=47 // pred_check
          %p754 = pneg %p114
        $region50: #{tpu_custom_call.1} parent=47 // pred_check_branch
          %756 = sbr.rel (%p754) target = $region52
        $region51: #{tpu_custom_call.1} parent=47 // pred_region
          %s757 = sand.u32 %s99, 1
          %s758 = scalar_lea.sflag [#allocation6], %s757
          %s759 = sand.u32 %s99, 1
          %s760 = smul.addr %s759, 16
          %s761 = scalar_lea.vmem [#allocation9], %s760
          %762 = dma.done %s758, 256
        $region52: #{tpu_custom_call.1} parent=47 // pred_fallthru
          _
      $region48: #{tpu_custom_call.1} parent=5 // pred_fallthru
        _
    $region6: #{tpu_custom_call.1} parent=1 // loop_footer
      %s21 = sadd.s32 1, %s17
    $region7: #{tpu_custom_call.1} parent=1 // loop_footer_branch
      %16 = sbr.rel target = $region3
    $region8: #{tpu_custom_call.1} parent=1 // loop_exit
      _
    %763 = vsyncpa [#allocation5], 1
    %s764 = scalar_lea.sflag [#allocation5], 1
    %765 = vsyncpa %s764, 1
    %766 = vsyncpa [#allocation6], 1
    %s767 = scalar_lea.sflag [#allocation6], 1
    %768 = vsyncpa %s767, 1
    %769 = vsyncpa [#allocation7], 1
    %s770 = scalar_lea.sflag [#allocation7], 1
    %771 = vsyncpa %s770, 1

</llo_original>
